<compile_context>
chip_gen: v7x
topology: tpu7x:2x2x1
jax: 0.10.0
libtpu: 0.0.40
codegen_flags: <defaults>
</compile_context>

<pallas_src>
import functools

import jax
import jax.numpy as jnp
from jax.experimental import pallas as pl
from jax.experimental.pallas import tpu as pltpu


# --------------------------------------------------------------------------- #
# Phase 1: per-sample raw moments (sum, sum of squares) per channel.
# --------------------------------------------------------------------------- #
def _stats_kernel(x_ref, mom_ref, s_acc, ss_acc, *, lane_acc, n_par):
    hw = pl.program_id(1)
    hw_last = pl.num_programs(1) - 1
    hw_tile = x_ref.shape[2]
    n_chunks = hw_tile // lane_acc

    # Fused chunked accumulation: never materialize a full-tile f32 upcast or
    # x*x temporary; keep only (C, lane_acc) slabs live.  n_par independent
    # accumulator streams shorten the serial add chain.
    ps = [None] * n_par
    pss = [None] * n_par
    for j in range(n_chunks):
        c = x_ref[0, :, j * lane_acc:(j + 1) * lane_acc].astype(jnp.float32)
        k = j % n_par
        if ps[k] is None:
            ps[k] = c
            pss[k] = c * c
        else:
            ps[k] = ps[k] + c
            pss[k] = pss[k] + c * c
    s_part = ps[0]
    ss_part = pss[0]
    for k in range(1, n_par):
        if ps[k] is not None:
            s_part = s_part + ps[k]
            ss_part = ss_part + pss[k]

    @pl.when(hw == 0)
    def _():  # new sample: reset lane-partial accumulators
        s_acc[...] = jnp.zeros_like(s_acc)
        ss_acc[...] = jnp.zeros_like(ss_acc)

    s_acc[...] += s_part
    ss_acc[...] += ss_part

    @pl.when(hw == hw_last)
    def _():  # single cheap cross-lane reduce per sample
        mom_ref[0, :, 0:1] = jnp.sum(s_acc[...], axis=-1, keepdims=True)
        mom_ref[0, :, 1:2] = jnp.sum(ss_acc[...], axis=-1, keepdims=True)


# --------------------------------------------------------------------------- #
# Phase 2: out = x * scale + shift   (params pre-merged in the wrapper).
# --------------------------------------------------------------------------- #
def _norm_kernel(x_ref, p_ref, o_ref, *, Cb, Ci, fused):
    scale = p_ref[0, :, 0:1]                       # (C_out, 1) broadcast over lanes
    shift = p_ref[0, :, 1:2]
    # TODO(synk): for bf16 inputs on v6e/v7x the FMA could stay in bf16; we keep
    # the f32 upcast for exact parity with the f32 reference and v5e safety.
    if fused:
        # Even C: input channels map 1:1 to output channels -> one full-tile
        # FMA and one unsliced, lane-dense store.
        x = x_ref[0].astype(jnp.float32)           # (C, hw_tile)
        o_ref[0] = (x * scale + shift).astype(o_ref.dtype)
    else:
        # Odd C: replicate the PyTorch slicing quirk (middle channel dropped).
        x = x_ref[0].astype(jnp.float32)
        xb = x[:Cb, :]
        xi = x[Ci:, :]
        o_ref[0, :Cb, :] = (xb * scale[:Cb] + shift[:Cb]).astype(o_ref.dtype)
        o_ref[0, Cb:, :] = (xi * scale[Cb:] + shift[Cb:]).astype(o_ref.dtype)


# --------------------------------------------------------------------------- #
# Tiling / VMEM-budget helpers.
# --------------------------------------------------------------------------- #
def _tpu_vmem_bytes():
    """Physical per-core VMEM; conservative (v7x) fallback if query fails."""
    try:
        info = pltpu.get_tpu_info()
        v = getattr(info, "vmem_capacity_bytes", None)
        if v:
            return int(v)
    except Exception:
        pass
    return 64 << 20


def _pick_hw_tile(HW_pad, C, itemsize, max_block_bytes, max_lanes):
    """Largest multiple-of-128 divisor of HW_pad within the byte/lane budget."""
    budget = max(128, min(max_lanes, max_block_bytes // max(1, C * itemsize)))
    budget = min((budget // 128) * 128, HW_pad)
    for t in range(budget, 127, -128):
        if HW_pad % t == 0:
            return t
    return 128  # HW_pad is a multiple of 128, so this always divides


def _pick_lane_acc(hw_tile, C):
    """Accumulator chunk width: keep a (C, lane_acc) f32 slab around <=16 KiB."""
    target = max(128, (4096 // max(C, 1) // 128) * 128)
    for cand in (1024, 512, 256, 128):
        if cand <= target and hw_tile % cand == 0:
            return cand
    return 128


# --------------------------------------------------------------------------- #
# Public entry point.
# --------------------------------------------------------------------------- #
def ibnorm(x, gamma, beta, eps=1e-5, hw_tile=None):
    """x: (N, C, H, W) NCHW.  gamma/beta: (C//2,) BatchNorm affine params."""
    N, C, H, W = x.shape
    assert C >= 2, "IBNorm needs at least 2 channels"
    Cb = C // 2              # BatchNorm channels
    Ci = C - Cb              # InstanceNorm slice start (matches PyTorch module)
    Cin = C - Ci             # InstanceNorm channel count (== Cb)
    C_out = Cb + Cin         # == C for even C; == C-1 for odd C (PyTorch quirk)
    HW = H * W
    itemsize = jnp.dtype(x.dtype).itemsize
    eps = float(eps)

    # ---- layout: (N, C, HW), padded to a lane-dense multiple of 128 --------
    x3 = x.reshape(N, C, HW)
    HW_pad = ((HW + 127) // 128) * 128
    if HW_pad != HW:
        # Zero padding is stats-neutral: we divide by the true counts below.
        x3 = jnp.pad(x3, ((0, 0), (0, 0), (0, HW_pad - HW)))

    # ---- generation-aware tiling & VMEM budget ------------------------------
    vmem_cap = _tpu_vmem_bytes()
    big_vmem = vmem_cap >= (100 << 20)                 # v5e/v6e: 128 MiB VMEM
    if hw_tile is None:
        max_block_bytes = (8 << 20) if big_vmem else (4 << 20)
        max_lanes = 32768 if C * itemsize <= 64 else 16384
        hw_tile = _pick_hw_tile(HW_pad, C, itemsize, max_block_bytes, max_lanes)
    assert HW_pad % hw_tile == 0 and hw_tile % 128 == 0
    n_hw = HW_pad // hw_tile
    lane_acc = _pick_lane_acc(hw_tile, C)

    block_in = C * hw_tile * itemsize
    block_out = C_out * hw_tile * itemsize
    scratch_bytes = 2 * C * lane_acc * 4
    vmem_budget_cap = (96 << 20) if big_vmem else (48 << 20)
    vmem_limit = int(min(vmem_budget_cap,
                         max(2 * block_in + 2 * block_out + scratch_bytes
                             + (4 << 20), 16 << 20)))

    # ---- Phase 1: streaming per-sample moments (megacore-parallel over N) ---
    stats_kernel = functools.partial(_stats_kernel, lane_acc=lane_acc, n_par=2)
    moments = pl.pallas_call(
        stats_kernel,
        out_shape=jax.ShapeDtypeStruct((N, C, 2), jnp.float32),
        grid_spec=pltpu.PrefetchScalarGridSpec(
            num_scalar_prefetch=0,
            grid=(N, n_hw),
            in_specs=[pl.BlockSpec((1, C, hw_tile), lambda n, h: (n, 0, h))],
            out_specs=pl.BlockSpec((1, C, 2), lambda n, h: (n, 0, 0)),
            scratch_shapes=[
                pltpu.VMEM((C, lane_acc), jnp.float32),   # lane-partial sum
                pltpu.VMEM((C, lane_acc), jnp.float32),   # lane-partial sum x^2
            ]),
        compiler_params=pltpu.CompilerParams(
            dimension_semantics=("parallel", "arbitrary"),
            vmem_limit_bytes=vmem_limit),
        cost_estimate=pl.CostEstimate(
            flops=3 * N * C * HW_pad,
            transcendentals=0,
            bytes_accessed=N * C * HW_pad * itemsize),
    )(x3)

    # ---- Wrapper finalize: fused scale/shift, merged into one params tensor -
    # NOTE: single-pass E[x^2]-E[x]^2 in f32; the max(.,0) clamp guards against
    # cancellation when |mean| >> std.
    sums = moments[..., 0]                             # (N, C)
    sqs = moments[..., 1]
    g = gamma.astype(jnp.float32)
    b = beta.astype(jnp.float32)

    bn_mean = jnp.sum(sums[:, :Cb], axis=0) / jnp.float32(N * HW)     # (Cb,)
    bn_ex2 = jnp.sum(sqs[:, :Cb], axis=0) / jnp.float32(N * HW)
    bn_var = jnp.maximum(bn_ex2 - bn_mean * bn_mean, 0.0)
    bn_scale = g * jax.lax.rsqrt(bn_var + eps)
    bn_shift = b - bn_mean * bn_scale

    in_mean = sums[:, Ci:] / jnp.float32(HW)                          # (N, Cin)
    in_ex2 = sqs[:, Ci:] / jnp.float32(HW)
    in_var = jnp.maximum(in_ex2 - in_mean * in_mean, 0.0)
    in_scale = jax.lax.rsqrt(in_var + eps)
    in_shift = -in_mean * in_scale

    scale_all = jnp.concatenate(
        [jnp.broadcast_to(bn_scale[None, :], (N, Cb)), in_scale], axis=1)
    shift_all = jnp.concatenate(
        [jnp.broadcast_to(bn_shift[None, :], (N, Cb)), in_shift], axis=1)
    params = jnp.stack([scale_all, shift_all], axis=-1)               # (N, C_out, 2)

    # ---- Phase 2: one FMA per element, fully parallel, lane-dense stores ----
    fused = (Cb == Ci)   # even C -> single full-tile store
    norm_kernel = functools.partial(_norm_kernel, Cb=Cb, Ci=Ci, fused=fused)
    out3 = pl.pallas_call(
        norm_kernel,
        out_shape=jax.ShapeDtypeStruct((N, C_out, HW_pad), x.dtype),
        grid_spec=pltpu.PrefetchScalarGridSpec(
            num_scalar_prefetch=0,
            grid=(N, n_hw),
            in_specs=[
                pl.BlockSpec((1, C, hw_tile), lambda n, h: (n, 0, h)),
                pl.BlockSpec((1, C_out, 2), lambda n, h: (n, 0, 0)),
            ],
            out_specs=pl.BlockSpec((1, C_out, hw_tile), lambda n, h: (n, 0, h))),
        compiler_params=pltpu.CompilerParams(
            dimension_semantics=("parallel", "parallel"),
            vmem_limit_bytes=vmem_limit),
        cost_estimate=pl.CostEstimate(
            flops=2 * N * C_out * HW_pad,
            transcendentals=0,
            bytes_accessed=(N * C + N * C_out) * HW_pad * itemsize),
    )(x3, params)

    if HW_pad != HW:
        out3 = out3[:, :, :HW]
    return out3.reshape(N, C_out, H, W)


# --------------------------------------------------------------------------- #
# Pure-JAX reference mirroring the PyTorch forward (training mode).
# --------------------------------------------------------------------------- #
def ibnorm_ref(x, gamma, beta, eps=1e-5):
    N, C, H, W = x.shape
    Cb = C // 2
    Ci = C - Cb
    xb = x[:, :Cb]
    mean_b = xb.mean(axis=(0, 2, 3), keepdims=True)
    var_b = ((xb - mean_b) ** 2).mean(axis=(0, 2, 3), keepdims=True)
    bn = ((xb - mean_b) / jnp.sqrt(var_b + eps)
          * gamma.reshape(1, Cb, 1, 1) + beta.reshape(1, Cb, 1, 1))
    xi = x[:, Ci:]
    mean_i = xi.mean(axis=(2, 3), keepdims=True)
    var_i = ((xi - mean_i) ** 2).mean(axis=(2, 3), keepdims=True)
    inn = (xi - mean_i) / jnp.sqrt(var_i + eps)
    return jnp.concatenate([bn, inn], axis=1)


if __name__ == "__main__":
    key = jax.random.PRNGKey(0)
    kx, kg, kb, kx2, kx3, kg3, kb3 = jax.random.split(key, 7)

    # --- main case: even C, HW a multiple of 128 ---------------------------
    N, C, H, W = 2, 4, 16, 16
    x = jax.random.normal(kx, (N, C, H, W), dtype=jnp.float32)
    Cb = C // 2
    gamma = 1.0 + 0.1 * jax.random.normal(kg, (Cb,), dtype=jnp.float32)
    beta = 0.1 * jax.random.normal(kb, (Cb,), dtype=jnp.float32)

    ref = ibnorm_ref(x, gamma, beta)
    out = jax.block_until_ready(ibnorm(x, gamma, beta))
    assert out.shape == ref.shape, (out.shape, ref.shape)
    assert jnp.allclose(out, ref, atol=5e-5, rtol=1e-5), "mismatch (default tile)"

    # --- force a smaller HW tile to exercise multi-tile accumulation --------
    out_tiled = jax.block_until_ready(ibnorm(x, gamma, beta, hw_tile=128))
    assert jnp.allclose(out_tiled, ref, atol=5e-5, rtol=1e-5), "mismatch (hw_tile=128)"

    # --- HW not a multiple of 128: padded streaming path --------------------
    H2, W2 = 10, 13
    x2 = jax.random.normal(kx2, (N, C, H2, W2), dtype=jnp.float32)
    ref2 = ibnorm_ref(x2, gamma, beta)
    out2 = jax.block_until_ready(ibnorm(x2, gamma, beta))
    assert out2.shape == ref2.shape, (out2.shape, ref2.shape)
    assert jnp.allclose(out2, ref2, atol=5e-5, rtol=1e-5), "mismatch (padded HW)"

    # --- odd channel count: PyTorch-quirk slicing (middle channel dropped) --
    C3 = 5
    x5 = jax.random.normal(kx3, (N, C3, H, W), dtype=jnp.float32)
    g3 = 1.0 + 0.1 * jax.random.normal(kg3, (C3 // 2,), dtype=jnp.float32)
    b3 = 0.1 * jax.random.normal(kb3, (C3 // 2,), dtype=jnp.float32)
    ref3 = ibnorm_ref(x5, g3, b3)
    out3 = jax.block_until_ready(ibnorm(x5, g3, b3))
    assert out3.shape == ref3.shape, (out3.shape, ref3.shape)
    assert jnp.allclose(out3, ref3, atol=5e-5, rtol=1e-5), "mismatch (odd C)"

    print("KERNEL_OK")
</pallas_src>

<mosaic_0001>
module attributes {stable_mosaic.version = 11 : i64} {
  func.func @_stats_kernel(%arg0: i32, %arg1: i32, %arg2: memref<1x4x256xf32, #tpu.memory_space<vmem>>, %arg3: memref<1x4x2xf32, #tpu.memory_space<vmem>>, %arg4: memref<4x256xf32, #tpu.memory_space<vmem>>, %arg5: memref<4x256xf32, #tpu.memory_space<vmem>>) attributes {dimension_semantics = [#tpu.dimension_semantics<parallel>, #tpu.dimension_semantics<arbitrary>], iteration_bounds = array<i64: 2, 1>, scalar_prefetch = 0 : i64, scratch_operands = 2 : i64, tpu.core_type = #tpu.core_type<tc>, window_params = [{transform_indices = @transform_0, window_bounds = array<i64: 1, 4, 256>}, {transform_indices = @transform_1, window_bounds = array<i64: 1, 4, 2>}]} {
    %c0 = arith.constant 0 : index
    %c0_0 = arith.constant 0 : index
    %c0_1 = arith.constant 0 : index
    %0 = vector.load %arg2[%c0, %c0_0, %c0_1] : memref<1x4x256xf32, #tpu.memory_space<vmem>>, vector<1x4x256xf32>
    %1 = vector.shape_cast %0 : vector<1x4x256xf32> to vector<4x256xf32>
    %2 = arith.mulf %1, %1 : vector<4x256xf32>
    %c0_i32 = arith.constant 0 : i32
    %3 = arith.cmpi eq, %arg1, %c0_i32 : i32
    %4 = arith.extui %3 : i1 to i32
    %c0_i32_2 = arith.constant 0 : i32
    %5 = arith.cmpi ne, %4, %c0_i32_2 : i32
    scf.if %5 {
      %cst = arith.constant 0.000000e+00 : f32
      %15 = vector.broadcast %cst : f32 to vector<4x256xf32>
      %c0_13 = arith.constant 0 : index
      %c0_14 = arith.constant 0 : index
      %16 = vector.load %arg4[%c0_13, %c0_14] : memref<4x256xf32, #tpu.memory_space<vmem>>, vector<4x256xf32>
      tpu.vector_store %arg4[%c0_13, %c0_14], %15 {strides = array<i32>} : memref<4x256xf32, #tpu.memory_space<vmem>>, vector<4x256xf32>,
      %cst_15 = arith.constant 0.000000e+00 : f32
      %17 = vector.broadcast %cst_15 : f32 to vector<4x256xf32>
      %c0_16 = arith.constant 0 : index
      %c0_17 = arith.constant 0 : index
      %18 = vector.load %arg5[%c0_16, %c0_17] : memref<4x256xf32, #tpu.memory_space<vmem>>, vector<4x256xf32>
      tpu.vector_store %arg5[%c0_16, %c0_17], %17 {strides = array<i32>} : memref<4x256xf32, #tpu.memory_space<vmem>>, vector<4x256xf32>,
    } else {
    }
    %c0_3 = arith.constant 0 : index
    %c0_4 = arith.constant 0 : index
    %6 = vector.load %arg4[%c0_3, %c0_4] : memref<4x256xf32, #tpu.memory_space<vmem>>, vector<4x256xf32>
    %7 = arith.addf %6, %1 : vector<4x256xf32>
    %c0_5 = arith.constant 0 : index
    %c0_6 = arith.constant 0 : index
    %8 = vector.load %arg4[%c0_5, %c0_6] : memref<4x256xf32, #tpu.memory_space<vmem>>, vector<4x256xf32>
    tpu.vector_store %arg4[%c0_5, %c0_6], %7 {strides = array<i32>} : memref<4x256xf32, #tpu.memory_space<vmem>>, vector<4x256xf32>,
    %c0_7 = arith.constant 0 : index
    %c0_8 = arith.constant 0 : index
    %9 = vector.load %arg5[%c0_7, %c0_8] : memref<4x256xf32, #tpu.memory_space<vmem>>, vector<4x256xf32>
    %10 = arith.addf %9, %2 : vector<4x256xf32>
    %c0_9 = arith.constant 0 : index
    %c0_10 = arith.constant 0 : index
    %11 = vector.load %arg5[%c0_9, %c0_10] : memref<4x256xf32, #tpu.memory_space<vmem>>, vector<4x256xf32>
    tpu.vector_store %arg5[%c0_9, %c0_10], %10 {strides = array<i32>} : memref<4x256xf32, #tpu.memory_space<vmem>>, vector<4x256xf32>,
    %c0_i32_11 = arith.constant 0 : i32
    %12 = arith.cmpi eq, %arg1, %c0_i32_11 : i32
    %13 = arith.extui %12 : i1 to i32
    %c0_i32_12 = arith.constant 0 : i32
    %14 = arith.cmpi ne, %13, %c0_i32_12 : i32
    scf.if %14 {
      %c0_13 = arith.constant 0 : index
      %c0_14 = arith.constant 0 : index
      %15 = vector.load %arg4[%c0_13, %c0_14] : memref<4x256xf32, #tpu.memory_space<vmem>>, vector<4x256xf32>
      %cst = arith.constant dense<0.000000e+00> : vector<4xf32>
      %16 = vector.multi_reduction <add>, %15, %cst [1] : vector<4x256xf32> to vector<4xf32>
      %17 = vector.shape_cast %16 : vector<4xf32> to vector<4x1xf32>
      %c0_15 = arith.constant 0 : index
      %c0_16 = arith.constant 0 : index
      %c0_17 = arith.constant 0 : index
      %18 = vector.load %arg3[%c0_15, %c0_16, %c0_17] : memref<1x4x2xf32, #tpu.memory_space<vmem>>, vector<1x4x1xf32>
      %19 = vector.shape_cast %18 : vector<1x4x1xf32> to vector<4x1xf32>
      %20 = vector.shape_cast %17 : vector<4x1xf32> to vector<1x4x1xf32>
      tpu.vector_store %arg3[%c0_15, %c0_16, %c0_17], %20 {strides = array<i32>} : memref<1x4x2xf32, #tpu.memory_space<vmem>>, vector<1x4x1xf32>,
      %c0_18 = arith.constant 0 : index
      %c0_19 = arith.constant 0 : index
      %21 = vector.load %arg5[%c0_18, %c0_19] : memref<4x256xf32, #tpu.memory_space<vmem>>, vector<4x256xf32>
      %cst_20 = arith.constant dense<0.000000e+00> : vector<4xf32>
      %22 = vector.multi_reduction <add>, %21, %cst_20 [1] : vector<4x256xf32> to vector<4xf32>
      %23 = vector.shape_cast %22 : vector<4xf32> to vector<4x1xf32>
      %c0_21 = arith.constant 0 : index
      %c0_22 = arith.constant 0 : index
      %c1 = arith.constant 1 : index
      %24 = vector.load %arg3[%c0_21, %c0_22, %c1] : memref<1x4x2xf32, #tpu.memory_space<vmem>>, vector<1x4x1xf32>
      %25 = vector.shape_cast %24 : vector<1x4x1xf32> to vector<4x1xf32>
      %26 = vector.shape_cast %23 : vector<4x1xf32> to vector<1x4x1xf32>
      tpu.vector_store %arg3[%c0_21, %c0_22, %c1], %26 {strides = array<i32>} : memref<1x4x2xf32, #tpu.memory_space<vmem>>, vector<1x4x1xf32>,
    } else {
    }
    return
  }
  func.func @transform_0(%arg0: i32, %arg1: i32) -> (i32, i32, i32) {
    %c0_i32 = arith.constant 0 : i32
    %c0_i32_0 = arith.constant 0 : i32
    return %arg0, %c0_i32, %arg1 : i32, i32, i32
  }
  func.func @transform_1(%arg0: i32, %arg1: i32) -> (i32, i32, i32) {
    %c0_i32 = arith.constant 0 : i32
    %c0_i32_0 = arith.constant 0 : i32
    %c0_i32_1 = arith.constant 0 : i32
    return %arg0, %c0_i32, %c0_i32_0 : i32, i32, i32
  }
}

</mosaic_0001>

<llo_original>
// kernel: tpu_custom_call.1
$region0: #{tpu_custom_call.1}
  #allocation0 [shape = 'u32[]', space=smem, size = 0x4, offset = 0x4, fixed_abs, tag = 'smem constant byte address 0x4 - core index']
  #allocation1 [shape = 'u32[144,128]{1,0:T(1,128)}', space=vmem, size = 0x12000, scoped, tag = 'internal scratch']
  #allocation2 [shape = 'f32[4,256]{1,0:T(4,128)}', space=vmem, size = 0x1000, scoped, tag = 'scratch operand']
  #allocation3 [shape = 'f32[4,256]{1,0:T(4,128)}', space=vmem, size = 0x1000, scoped, tag = 'scratch operand']
  %s0 = inlined_call_operand.hbm [shape: f32[2,4,256], index: 0, kind: input, shape index: {}]
  %s1 = inlined_call_operand.vmem [shape: f32[2,4,2], index: 1, kind: output, shape index: {}]
  %s2 = sld [smem:[#allocation0]]
  $region49: #{tpu_custom_call.1} parent=0
    _
  %s4 = ssub.s32 1, %s2
  %s5 = scalar_select 0, %s4, %s2
  $region1: #{tpu_custom_call.1} parent=0
    #allocation4 [shape = 'u8[8192]{0}', space=vmem, size = 0x2000, scoped, tag = 'input window, operand 0']
    #allocation5 [shape = 's32[2]{0}', space=sflag, size = 0x8, scoped, tag = 'scoped memory for tpu_custom_call.1']
    %6 = vsyncpa [#allocation5], 0
    %s7 = scalar_lea.sflag [#allocation5], 1
    %8 = vsyncpa %s7, 0
    loop: start=0, step=1, limit=4
    $region2: #{tpu_custom_call.1} parent=1 // loop_pre_header
      _
    $region3: #{tpu_custom_call.1} parent=1 // loop_header
      %s10 = sphi 0, %s14
      %p11 = scmp.ge.s32.totalorder %s10, 4
      %s17 = sphi 0, %s29
      %s18 = sphi 0, %s25
      %s19 = sphi 0, %s17
      %s20 = sphi 0, %s18
      %s21 = sphi 0, %s19
      %s22 = sphi 0, %s20
      %s34 = sphi 0, %s36
      %s37 = sphi 0, %s34
      %s38 = sphi 0, %s37
      %s54 = sphi 0, %s38
      %s60 = sphi 0, %s62
      %s63 = sphi 0, %s60
      %s64 = sphi 0, %s63
      %s80 = sphi 0, %s64
    $region4: #{tpu_custom_call.1} parent=1 // loop_header_branch
      %13 = sbr.rel (%p11) target = $region8
    $region5: #{tpu_custom_call.1} parent=1 // loop_body
      %s15 = ssub.s32 %s10, 1
      %s16 = ssub.s32 %s10, 2
      %s23 = sadd.s32 1, %s18
      %p24 = scmp.ge.s32.totalorder %s23, 1
      %s25 = scalar_select %p24, 0, %s23
      %s26 = sadd.s32 1, %s17
      %s27 = scalar_select %p24, %s26, %s17
      %p28 = scmp.ge.s32.totalorder %s27, 2
      %s29 = scalar_select %p28, 0, %s27
      %s30 = ssub.s32 %s17, %s29
      %s31 = ssub.s32 %s18, %s25
      %s32 = sor.u32 %s30, %s31
      %p33 = scmp.eq.s32.totalorder %s32, 0
      %s35 = sadd.s32 %s34, 1
      %s36 = scalar_select %p33, %s34, %s35
      %p39 = pneg %p33
      %p40 = scmp.eq.s32.totalorder %s10, 1
      %p41 = por %p39, %p40
      %p42 = scmp.ne.s32.totalorder %s34, %s37
      %p43 = scmp.eq.s32.totalorder %s10, 0
      %p44 = por %p42, %p43
      %p45 = scmp.ne.s32.totalorder %s34, %s37
      %p46 = scmp.eq.s32.totalorder %s15, 1
      %p47 = por %p45, %p46
      %p48 = scmp.ne.s32.totalorder %s37, %s38
      %p49 = scmp.eq.s32.totalorder %s15, 0
      %p50 = por %p48, %p49
      %p51 = scmp.ne.s32.totalorder %s37, %s38
      %p52 = scmp.eq.s32.totalorder %s16, 1
      %p53 = por %p51, %p52
      %p55 = scmp.ne.s32.totalorder %s38, %s54
      %p56 = scmp.eq.s32.totalorder %s16, 0
      %p57 = por %p55, %p56
      %s58 = ssub.s32 %s17, %s29
      %p59 = scmp.eq.s32.totalorder %s58, 0
      %s61 = sadd.s32 %s60, 1
      %s62 = scalar_select %p59, %s60, %s61
      %p65 = pneg %p59
      %p66 = scmp.eq.s32.totalorder %s10, 1
      %p67 = por %p65, %p66
      %p68 = scmp.ne.s32.totalorder %s60, %s63
      %p69 = scmp.eq.s32.totalorder %s10, 0
      %p70 = por %p68, %p69
      %p71 = scmp.ne.s32.totalorder %s60, %s63
      %p72 = scmp.eq.s32.totalorder %s15, 1
      %p73 = por %p71, %p72
      %p74 = scmp.ne.s32.totalorder %s63, %s64
      %p75 = scmp.eq.s32.totalorder %s15, 0
      %p76 = por %p74, %p75
      %p77 = scmp.ne.s32.totalorder %s63, %s64
      %p78 = scmp.eq.s32.totalorder %s16, 1
      %p79 = por %p77, %p78
      %p81 = scmp.ne.s32.totalorder %s64, %s80
      %p82 = scmp.eq.s32.totalorder %s16, 0
      %p83 = por %p81, %p82
      %p84 = scmp.le.s32.totalorder 1, %s10
      %p85 = scmp.lt.s32.totalorder %s10, 3
      %p86 = pnand %p84, %p85
      %p87 = pneg %p86
      // Predicated region
      $region9: #{tpu_custom_call.1} parent=5 // pred_check
        _
      $region10: #{tpu_custom_call.1} parent=5 // pred_check_branch
        %89 = sbr.rel (%p86) target = $region12
      $region11: #{tpu_custom_call.1} parent=5 // pred_region
        %s90 = ssub.s32 %s10, 1
      $region12: #{tpu_custom_call.1} parent=5 // pred_fallthru
        _
      %p91 = scmp.lt.s32.totalorder %s10, 2
      // Predicated region
      $region13: #{tpu_custom_call.1} parent=5 // pred_check
        %p92 = pneg %p91
      $region14: #{tpu_custom_call.1} parent=5 // pred_check_branch
        %94 = sbr.rel (%p92) target = $region16
      $region15: #{tpu_custom_call.1} parent=5 // pred_region
        // Predicated region
        $region17: #{tpu_custom_call.1} parent=15 // pred_check
          %p95 = pneg %p44
        $region18: #{tpu_custom_call.1} parent=15 // pred_check_branch
          %97 = sbr.rel (%p95) target = $region20
        $region19: #{tpu_custom_call.1} parent=15 // pred_region
          %s98 = sand.u32 %s34, 1
          %s99 = scalar_lea.sflag [#allocation5], %s98
          %s100 = sand.u32 %s34, 1
          %s101 = smul.addr %s100, 8
          %s102 = scalar_lea.vmem [#allocation4], %s101
          %s103 = smul.u32 2, %s18
          %s105 = ssub.s32 128, 128
          %106 = vsyncadd %s99, %s105
          %s107 = smul.addr %s17, 2
          %s108 = sadd.s32 %s103, %s107
          %s109 = smul.addr %s108, 64
          %s110 = scalar_lea.hbm %s0, %s109
          %s112 = sshll.u32 %s102, 4
          %s113 = int_to_ptr.vmem [resolvable:$true] %s112
          %115 = dma.hbm_to_vmem [thread:$0]  %s110, 128, %s113, %s99
        $region20: #{tpu_custom_call.1} parent=15 // pred_fallthru
          _
      $region16: #{tpu_custom_call.1} parent=5 // pred_fallthru
        _
      %p116 = scmp.le.s32.totalorder 1, %s10
      %p117 = scmp.lt.s32.totalorder %s10, 3
      %p118 = pnand %p116, %p117
      %p119 = pneg %p118
      // Predicated region
      $region21: #{tpu_custom_call.1} parent=5 // pred_check
        _
      $region22: #{tpu_custom_call.1} parent=5 // pred_check_branch
        %121 = sbr.rel (%p118) target = $region24
      $region23: #{tpu_custom_call.1} parent=5 // pred_region
        %s122 = ssub.s32 %s10, 1
        %s123 = sand.u32 %s37, 1
        %s124 = scalar_lea.sflag [#allocation5], %s123
        %s125 = sand.u32 %s37, 1
        %s126 = smul.addr %s125, 8
        %s127 = scalar_lea.vmem [#allocation4], %s126
        // Predicated region
        $region25: #{tpu_custom_call.1} parent=23 // pred_check
          %p128 = pneg %p50
        $region26: #{tpu_custom_call.1} parent=23 // pred_check_branch
          %130 = sbr.rel (%p128) target = $region28
        $region27: #{tpu_custom_call.1} parent=23 // pred_region
          %131 = dma.done %s124, 128
        $region28: #{tpu_custom_call.1} parent=23 // pred_fallthru
          _
        %s132 = sand.u32 %s37, 1
        %s133 = scalar_lea.sflag [#allocation5], %s132
        %s134 = sand.u32 %s37, 1
        %s135 = smul.addr %s134, 8
        %s136 = scalar_lea.vmem [#allocation4], %s135
        %p137 = pneg %p50
        %p138 = pneg %p47
        %p139 = pneg %p76
        %p140 = pneg %p73
        %p141 = scmp.lt.s32.totalorder %s19, 1
        %s142 = scalar_select %p141, %s19, 1
        %s143 = smul.addr %s142, 4
        %s144 = scalar_lea.vmem %s1, %s143
        %s145 = smul.u32 2, %s20
        %p146 = scmp.lt.s32.totalorder %s19, 1
        %s147 = scalar_select %p146, %s19, 1
        %s148 = smul.addr %s147, 4
        %s149 = scalar_lea.vmem %s1, %s148
        %v150 = vld [vmem:[%s127] sm:$0xff]
        %v151 = vmul.f32 %v150, %v150
        %p152 = scmp.eq.s32.totalorder %s20, 0
        // Predicated region
        $region29: #{tpu_custom_call.1} parent=23 // pred_check
          %p153 = pneg %p152
        $region30: #{tpu_custom_call.1} parent=23 // pred_check_branch
          %155 = sbr.rel (%p153) target = $region32
        $region31: #{tpu_custom_call.1} parent=23 // pred_region
          %156 = vst [vmem:[#allocation2] sm:$0xff] 0.0
          %157 = vst [vmem:[#allocation3] sm:$0xff] 0.0
        $region32: #{tpu_custom_call.1} parent=23 // pred_fallthru
          _
        %v158 = vld [vmem:[#allocation2] sm:$0xff]
        %v159 = vadd.f32 %v158, %v150
        %160 = vst [vmem:[#allocation2] sm:$0xff] %v159
        %v161 = vld [vmem:[#allocation3] sm:$0xff]
        %v162 = vadd.f32 %v161, %v151
        %163 = vst [vmem:[#allocation3] sm:$0xff] %v162
        // Predicated region
        $region33: #{tpu_custom_call.1} parent=23 // pred_check
          %p164 = pneg %p152
        $region34: #{tpu_custom_call.1} parent=23 // pred_check_branch
          %166 = sbr.rel (%p164) target = $region36
        $region35: #{tpu_custom_call.1} parent=23 // pred_region
          %v167 = vld [vmem:[#allocation2] sm:$0xff]
          %v169 = vcombine.high %v167, %v167
          %vm171 = vcmask 1043456
          %v172 = vsel %vm171, %v167, 0.0
          %v173 = vsel %vm171, %v169, 0.0
          %v174 = vadd.f32 %v172, %v173
          %175 = vadd.xlane.f32.xlu0 %v174
          %v176 = vpop.xlane.xlu0 %175
          %vm177 = vcmask 3072
          %178 = vst.msk [vmem:[%s149] sm:$0xf] %vm177, %v176
          %v179 = vld [vmem:[#allocation3] sm:$0xff]
          %v181 = vcombine.high %v179, %v179
          %v183 = vsel %vm171, %v179, 0.0
          %v184 = vsel %vm171, %v181, 0.0
          %v185 = vadd.f32 %v183, %v184
          %186 = vadd.xlane.f32.xlu0 %v185
          %v187 = vpop.xlane.xlu0 %186
          %vm188 = vcmask 11272
          %189 = vst.msk [vmem:[%s149] sm:$0xf] %vm188, %v187
        $region36: #{tpu_custom_call.1} parent=23 // pred_fallthru
          _
        %p190 = scmp.lt.s32.totalorder %s19, 1
        %s191 = scalar_select %p190, %s19, 1
        %s192 = smul.addr %s191, 4
        %s193 = scalar_lea.vmem %s1, %s192
        // Predicated region
        $region37: #{tpu_custom_call.1} parent=23 // pred_check
          %p194 = pneg %p73
        $region38: #{tpu_custom_call.1} parent=23 // pred_check_branch
          %196 = sbr.rel (%p194) target = $region40
        $region39: #{tpu_custom_call.1} parent=23 // pred_region
          _
        $region40: #{tpu_custom_call.1} parent=23 // pred_fallthru
          _
      $region24: #{tpu_custom_call.1} parent=5 // pred_fallthru
        _
      %p197 = scmp.le.s32.totalorder 2, %s10
      // Predicated region
      $region41: #{tpu_custom_call.1} parent=5 // pred_check
        %p198 = pneg %p197
      $region42: #{tpu_custom_call.1} parent=5 // pred_check_branch
        %200 = sbr.rel (%p198) target = $region44
      $region43: #{tpu_custom_call.1} parent=5 // pred_region
        %s201 = ssub.s32 %s10, 2
        // Predicated region
        $region45: #{tpu_custom_call.1} parent=43 // pred_check
          %p202 = pneg %p79
        $region46: #{tpu_custom_call.1} parent=43 // pred_check_branch
          %204 = sbr.rel (%p202) target = $region48
        $region47: #{tpu_custom_call.1} parent=43 // pred_region
          %p205 = scmp.lt.s32.totalorder %s21, 1
          %s206 = scalar_select %p205, %s21, 1
          %s207 = smul.addr %s206, 4
          %s208 = scalar_lea.vmem %s1, %s207
        $region48: #{tpu_custom_call.1} parent=43 // pred_fallthru
          _
      $region44: #{tpu_custom_call.1} parent=5 // pred_fallthru
        _
    $region6: #{tpu_custom_call.1} parent=1 // loop_footer
      %s14 = sadd.s32 1, %s10
    $region7: #{tpu_custom_call.1} parent=1 // loop_footer_branch
      %9 = sbr.rel target = $region3
    $region8: #{tpu_custom_call.1} parent=1 // loop_exit
      _
    %209 = vsyncpa [#allocation5], 1
    %s210 = scalar_lea.sflag [#allocation5], 1
    %211 = vsyncpa %s210, 1

</llo_original>
